<compile_context>
chip_gen: v5e
topology: v5e:2x2
jax: 0.10.0
libtpu: 0.0.40
codegen_flags: <defaults>
</compile_context>

<pallas_src>
import math

import jax
import jax.numpy as jnp
from jax.experimental import pallas as pl
from jax.experimental.pallas import tpu as pltpu


def _cdiv(a, b):
    return -(-a // b)


def _round_up(x, m):
    return ((x + m - 1) // m) * m


def _choose_tile(dim, cap, granule):
    """Largest tile <= cap, multiple of granule, minimizing padding waste."""
    dim_g = _round_up(max(dim, 1), granule)
    if dim_g <= cap:
        return dim_g
    n_tiles = _cdiv(dim_g, cap)
    return _round_up(_cdiv(dim_g, n_tiles), granule)


def _linear_kernel_f32(x_ref, w_ref, b_ref, o_ref):
    # x_ref: (TM, TK), w_ref: (TK, TN), b_ref: (1, TN), o_ref: (TM, TN) f32.
    # Output tile is resident across the K axis (same block index), so it
    # doubles as the accumulator: init with bias at k==0, accumulate after.
    k = pl.program_id(2)

    @pl.when(k == 0)
    def _():
        o_ref[...] = jnp.broadcast_to(b_ref[...], o_ref.shape)

    o_ref[...] += jnp.dot(
        x_ref[...], w_ref[...], preferred_element_type=jnp.float32
    )


def _linear_kernel_acc(x_ref, w_ref, b_ref, o_ref, acc_ref):
    # Fallback for non-f32 output dtypes: f32 VMEM accumulator + final cast.
    k = pl.program_id(2)

    @pl.when(k == 0)
    def _():
        acc_ref[...] = jnp.broadcast_to(
            b_ref[...].astype(jnp.float32), acc_ref.shape
        )

    acc_ref[...] += jnp.dot(
        x_ref[...], w_ref[...], preferred_element_type=jnp.float32
    )

    @pl.when(k == pl.num_programs(2) - 1)
    def _():
        o_ref[...] = acc_ref[...].astype(o_ref.dtype)


def linear_pred(seq, weight, bias):
    """Pallas equivalent of LinearPred.forward.

    seq:    (..., emb_dim)
    weight: (nb_classes, emb_dim)   (PyTorch nn.Linear layout)
    bias:   (nb_classes,)
    returns (..., nb_classes) in seq.dtype
    """
    emb_dim = seq.shape[-1]
    nb_classes = weight.shape[0]
    lead_shape = seq.shape[:-1]
    m = int(math.prod(lead_shape)) if lead_shape else 1

    # ---- tile sizes: 128-aligned lane dims, padding-waste-aware caps ----
    TM = _choose_tile(m, 1024, 8)
    TK = _choose_tile(emb_dim, 512, 128)
    TN = _choose_tile(nb_classes, 512, 128)

    m_pad = _round_up(m, TM)
    k_pad = _round_up(emb_dim, TK)
    n_pad = _round_up(nb_classes, TN)

    # Guarantee >= 2 blocks along a "parallel" grid axis so both TensorCores
    # are used on v7x; one extra grid step is negligible on 1-TC chips.
    if (m_pad // TM) * (n_pad // TN) == 1:
        if TN >= 256:
            TN //= 2
        elif TM >= 16:
            TM = _round_up(_cdiv(TM, 2), 8)
            m_pad = _round_up(m, TM)

    # ---- operand prep (zeros in padding contribute nothing) ----
    x2d = seq.reshape(m, emb_dim)
    if (m_pad, k_pad) != (m, emb_dim):
        x2d = jnp.pad(x2d, ((0, m_pad - m), (0, k_pad - emb_dim)))

    # One-time transpose to (K, N): canonical MXU contraction, no per-tile
    # RHS transpose inside the kernel.
    wt = weight.T
    if (k_pad, n_pad) != (emb_dim, nb_classes):
        wt = jnp.pad(wt, ((0, k_pad - emb_dim), (0, n_pad - nb_classes)))

    b2d = bias.reshape(1, nb_classes)
    if n_pad != nb_classes:
        b2d = jnp.pad(b2d, ((0, 0), (0, n_pad - nb_classes)))

    grid = (m_pad // TM, n_pad // TN, k_pad // TK)
    out_dtype = seq.dtype
    use_f32_path = out_dtype == jnp.float32

    # ---- cost estimate: account for tile-reuse re-streaming ----
    itemsize = jnp.dtype(out_dtype).itemsize
    x_bytes = m_pad * k_pad * jnp.dtype(x2d.dtype).itemsize
    w_bytes = k_pad * n_pad * jnp.dtype(wt.dtype).itemsize
    out_bytes = m_pad * n_pad * itemsize
    cost = pl.CostEstimate(
        flops=2 * m_pad * k_pad * n_pad,
        transcendentals=0,
        bytes_accessed=x_bytes * (n_pad // TN) + w_bytes * (m_pad // TM) + out_bytes,
    )

    # Double-buffered x/w/out tiles + bias (+ accumulator on fallback path),
    # with headroom; capped at 48 MiB to stay under v7x's 64 MiB physical VMEM.
    vmem_bytes = 4 * (
        2 * TM * TK + 2 * TK * TN + 2 * TM * TN + 2 * 8 * TN
        + (0 if use_f32_path else TM * TN)
    )
    vmem_limit = int(min(max(4 * vmem_bytes, 16 * 1024 * 1024), 48 * 1024 * 1024))

    in_specs = [
        pl.BlockSpec((TM, TK), lambda i, j, k: (i, k)),
        pl.BlockSpec((TK, TN), lambda i, j, k: (k, j)),
        pl.BlockSpec((1, TN), lambda i, j, k: (0, j)),
    ]
    out_spec = pl.BlockSpec((TM, TN), lambda i, j, k: (i, j))

    kernel = _linear_kernel_f32 if use_f32_path else _linear_kernel_acc
    scratch = [] if use_f32_path else [pltpu.VMEM((TM, TN), jnp.float32)]

    out = pl.pallas_call(
        kernel,
        out_shape=jax.ShapeDtypeStruct((m_pad, n_pad), out_dtype),
        grid_spec=pltpu.PrefetchScalarGridSpec(
            num_scalar_prefetch=0,
            grid=grid,
            in_specs=in_specs,
            out_specs=out_spec,
            scratch_shapes=scratch,
        ),
        compiler_params=pltpu.CompilerParams(
            dimension_semantics=("parallel", "parallel", "arbitrary"),
            vmem_limit_bytes=vmem_limit,
        ),
        cost_estimate=cost,
    )(x2d, wt, b2d)

    out = out[:m, :nb_classes]
    return out.reshape(*lead_shape, nb_classes)


def init_linear_pred_params(key, emb_dim, nb_classes):
    """Deterministic init matching nn.init.xavier_uniform_ + zero bias."""
    limit = math.sqrt(6.0 / (emb_dim + nb_classes))
    weight = jax.random.uniform(
        key, (nb_classes, emb_dim), dtype=jnp.float32,
        minval=-limit, maxval=limit)
    bias = jnp.zeros((nb_classes,), dtype=jnp.float32)
    return weight, bias


if __name__ == "__main__":
    emb_dim = 32
    nb_classes = 16
    batch, seq_len = 2, 8

    key = jax.random.PRNGKey(0)
    k_w, k_x = jax.random.split(key)

    weight, bias = init_linear_pred_params(k_w, emb_dim, nb_classes)
    seq = jax.random.normal(k_x, (batch, seq_len, emb_dim), dtype=jnp.float32)

    out = linear_pred(seq, weight, bias)
    out = jax.block_until_ready(out)

    # Reference check in plain JAX.
    ref = seq @ weight.T + bias
    assert out.shape == (batch, seq_len, nb_classes)
    assert jnp.allclose(out, ref, atol=1e-5, rtol=1e-5)

    print("KERNEL_OK")
</pallas_src>

<mosaic_0001>
module attributes {stable_mosaic.version = 11 : i64} {
  func.func @_linear_kernel_f32(%arg0: i32, %arg1: i32, %arg2: i32, %arg3: memref<8x128xf32, #tpu.memory_space<vmem>>, %arg4: memref<128x128xf32, #tpu.memory_space<vmem>>, %arg5: memref<1x128xf32, #tpu.memory_space<vmem>>, %arg6: memref<8x128xf32, #tpu.memory_space<vmem>>) attributes {dimension_semantics = [#tpu.dimension_semantics<parallel>, #tpu.dimension_semantics<parallel>, #tpu.dimension_semantics<arbitrary>], iteration_bounds = array<i64: 2, 1, 1>, scalar_prefetch = 0 : i64, scratch_operands = 0 : i64, tpu.core_type = #tpu.core_type<tc>, window_params = [{transform_indices = @transform_0, window_bounds = array<i64: 8, 128>}, {transform_indices = @transform_1, window_bounds = array<i64: 128, 128>}, {transform_indices = @transform_2, window_bounds = array<i64: 1, 128>}, {transform_indices = @transform_3, window_bounds = array<i64: 8, 128>}]} {
    %c0_i32 = arith.constant 0 : i32
    %0 = arith.cmpi eq, %arg2, %c0_i32 : i32
    %1 = arith.extui %0 : i1 to i32
    %c0_i32_0 = arith.constant 0 : i32
    %2 = arith.cmpi ne, %1, %c0_i32_0 : i32
    scf.if %2 {
      %c0_8 = arith.constant 0 : index
      %c0_9 = arith.constant 0 : index
      %9 = vector.load %arg5[%c0_8, %c0_9] : memref<1x128xf32, #tpu.memory_space<vmem>>, vector<1x128xf32>
      %10 = vector.shape_cast %9 : vector<1x128xf32> to vector<1x128xf32>
      %11 = vector.broadcast %10 : vector<1x128xf32> to vector<8x128xf32>
      %c0_10 = arith.constant 0 : index
      %c0_11 = arith.constant 0 : index
      %12 = vector.load %arg6[%c0_10, %c0_11] : memref<8x128xf32, #tpu.memory_space<vmem>>, vector<8x128xf32>
      tpu.vector_store %arg6[%c0_10, %c0_11], %11 {strides = array<i32>} : memref<8x128xf32, #tpu.memory_space<vmem>>, vector<8x128xf32>,
    } else {
    }
    %c0 = arith.constant 0 : index
    %c0_1 = arith.constant 0 : index
    %3 = vector.load %arg6[%c0, %c0_1] : memref<8x128xf32, #tpu.memory_space<vmem>>, vector<8x128xf32>
    %c0_2 = arith.constant 0 : index
    %c0_3 = arith.constant 0 : index
    %4 = vector.load %arg3[%c0_2, %c0_3] : memref<8x128xf32, #tpu.memory_space<vmem>>, vector<8x128xf32>
    %c0_4 = arith.constant 0 : index
    %c0_5 = arith.constant 0 : index
    %5 = vector.load %arg4[%c0_4, %c0_5] : memref<128x128xf32, #tpu.memory_space<vmem>>, vector<128x128xf32>
    %cst = arith.constant dense<0.000000e+00> : vector<8x128xf32>
    %6 = tpu.matmul %4, %5, %cst {dimension_numbers = #tpu.dot_dimension_numbers<[1], [0], [0], [1], [0, 0, 1, 1], [], []>} : vector<8x128xf32>, vector<128x128xf32>, vector<8x128xf32> -> vector<8x128xf32>
    %7 = arith.addf %3, %6 : vector<8x128xf32>
    %c0_6 = arith.constant 0 : index
    %c0_7 = arith.constant 0 : index
    %8 = vector.load %arg6[%c0_6, %c0_7] : memref<8x128xf32, #tpu.memory_space<vmem>>, vector<8x128xf32>
    tpu.vector_store %arg6[%c0_6, %c0_7], %7 {strides = array<i32>} : memref<8x128xf32, #tpu.memory_space<vmem>>, vector<8x128xf32>,
    return
  }
  func.func @transform_0(%arg0: i32, %arg1: i32, %arg2: i32) -> (i32, i32) {
    %c0_i32 = arith.constant 0 : i32
    return %arg0, %arg2 : i32, i32
  }
  func.func @transform_1(%arg0: i32, %arg1: i32, %arg2: i32) -> (i32, i32) {
    %c0_i32 = arith.constant 0 : i32
    return %arg2, %arg1 : i32, i32
  }
  func.func @transform_2(%arg0: i32, %arg1: i32, %arg2: i32) -> (i32, i32) {
    %c0_i32 = arith.constant 0 : i32
    %c0_i32_0 = arith.constant 0 : i32
    return %c0_i32, %arg1 : i32, i32
  }
  func.func @transform_3(%arg0: i32, %arg1: i32, %arg2: i32) -> (i32, i32) {
    %c0_i32 = arith.constant 0 : i32
    return %arg0, %arg1 : i32, i32
  }
}

</mosaic_0001>

<llo_original>
// kernel: tpu_custom_call.1
$region0: #{tpu_custom_call.1}
  #allocation0 [shape = 'u32[]', space=smem, size = 0x4, offset = 0x4, fixed_abs, tag = 'smem constant byte address 0x4 - core index']
  #allocation1 [shape = 'u32[72,128]{1,0:T(1,128)}', space=vmem, size = 0x9000, scoped, tag = 'internal scratch']
  %s0 = inlined_call_operand.hbm [shape: f32[16,128], index: 0, kind: input, shape index: {}]
  %s1 = inlined_call_operand.hbm [shape: f32[128,128], index: 1, kind: input, shape index: {}]
  %s2 = inlined_call_operand.vmem [shape: f32[1,128], index: 2, kind: input, shape index: {}]
  %s3 = inlined_call_operand.hbm [shape: f32[16,128], index: 3, kind: output, shape index: {}]
  %s4 = sld [smem:[#allocation0]]
  $region57: #{tpu_custom_call.1} parent=0
    _
  %s6 = ssub.s32 1, %s4
  %s7 = scalar_select 0, %s6, %s4
  $region1: #{tpu_custom_call.1} parent=0
    #allocation2 [shape = 'u8[8192]{0}', space=vmem, size = 0x2000, scoped, tag = 'input window, operand 0']
    #allocation3 [shape = 's32[2]{0}', space=sflag, size = 0x8, scoped, tag = 'scoped memory for tpu_custom_call.1']
    #allocation4 [shape = 's32[2]{0}', space=sflag, size = 0x8, scoped, tag = 'scoped memory for tpu_custom_call.1']
    #allocation5 [shape = 'u8[65536]{0}', space=vmem, size = 0x10000, scoped, tag = 'input window, operand 1, single buffered']
    #allocation6 [shape = 's32[1]{0}', space=sflag, size = 0x4, scoped, tag = 'scoped memory for tpu_custom_call.1']
    #allocation7 [shape = 'u8[8192]{0}', space=vmem, size = 0x2000, scoped, tag = 'output window, operand 0']
    %8 = vsyncpa [#allocation3], 0
    %s9 = scalar_lea.sflag [#allocation3], 1
    %10 = vsyncpa %s9, 0
    %11 = vsyncpa [#allocation6], 0
    %12 = vsyncpa [#allocation4], 0
    %s13 = scalar_lea.sflag [#allocation4], 1
    %14 = vsyncpa %s13, 0
    loop: start=0, step=1, limit=4
    $region2: #{tpu_custom_call.1} parent=1 // loop_pre_header
      _
    $region3: #{tpu_custom_call.1} parent=1 // loop_header
      %s16 = sphi 0, %s20
      %p17 = scmp.ge.s32.totalorder %s16, 4
      %s23 = sphi 0, %s42
      %s24 = sphi 0, %s38
      %s25 = sphi 0, %s34
      %s26 = sphi 0, %s23
      %s27 = sphi 0, %s24
      %s28 = sphi 0, %s25
      %s29 = sphi 0, %s26
      %s30 = sphi 0, %s27
      %s31 = sphi 0, %s28
      %s47 = sphi 0, %s49
      %s50 = sphi 0, %s47
      %s51 = sphi 0, %s50
      %s67 = sphi 0, %s51
      %s75 = sphi 0, %s77
      %s78 = sphi 0, %s75
      %s79 = sphi 0, %s78
      %s95 = sphi 0, %s79
      %s101 = sphi 0, %s103
      %s104 = sphi 0, %s101
      %s105 = sphi 0, %s104
      %s121 = sphi 0, %s105
      %s129 = sphi 0, %s131
      %s132 = sphi 0, %s129
      %s133 = sphi 0, %s132
      %s149 = sphi 0, %s133
    $region4: #{tpu_custom_call.1} parent=1 // loop_header_branch
      %19 = sbr.rel (%p17) target = $region8
    $region5: #{tpu_custom_call.1} parent=1 // loop_body
      %s21 = ssub.s32 %s16, 1
      %s22 = ssub.s32 %s16, 2
      %s32 = sadd.s32 1, %s25
      %p33 = scmp.ge.s32.totalorder %s32, 1
      %s34 = scalar_select %p33, 0, %s32
      %s35 = sadd.s32 1, %s24
      %s36 = scalar_select %p33, %s35, %s24
      %p37 = scmp.ge.s32.totalorder %s36, 1
      %s38 = scalar_select %p37, 0, %s36
      %s39 = sadd.s32 1, %s23
      %s40 = scalar_select %p37, %s39, %s23
      %p41 = scmp.ge.s32.totalorder %s40, 2
      %s42 = scalar_select %p41, 0, %s40
      %s43 = ssub.s32 %s23, %s42
      %s44 = ssub.s32 %s25, %s34
      %s45 = sor.u32 %s43, %s44
      %p46 = scmp.eq.s32.totalorder %s45, 0
      %s48 = sadd.s32 %s47, 1
      %s49 = scalar_select %p46, %s47, %s48
      %p52 = pneg %p46
      %p53 = scmp.eq.s32.totalorder %s16, 1
      %p54 = por %p52, %p53
      %p55 = scmp.ne.s32.totalorder %s47, %s50
      %p56 = scmp.eq.s32.totalorder %s16, 0
      %p57 = por %p55, %p56
      %p58 = scmp.ne.s32.totalorder %s47, %s50
      %p59 = scmp.eq.s32.totalorder %s21, 1
      %p60 = por %p58, %p59
      %p61 = scmp.ne.s32.totalorder %s50, %s51
      %p62 = scmp.eq.s32.totalorder %s21, 0
      %p63 = por %p61, %p62
      %p64 = scmp.ne.s32.totalorder %s50, %s51
      %p65 = scmp.eq.s32.totalorder %s22, 1
      %p66 = por %p64, %p65
      %p68 = scmp.ne.s32.totalorder %s51, %s67
      %p69 = scmp.eq.s32.totalorder %s22, 0
      %p70 = por %p68, %p69
      %s71 = ssub.s32 %s25, %s34
      %s72 = ssub.s32 %s24, %s38
      %s73 = sor.u32 %s71, %s72
      %p74 = scmp.eq.s32.totalorder %s73, 0
      %s76 = sadd.s32 %s75, 1
      %s77 = scalar_select %p74, %s75, %s76
      %p80 = pneg %p74
      %p81 = scmp.eq.s32.totalorder %s16, 1
      %p82 = por %p80, %p81
      %p83 = scmp.ne.s32.totalorder %s75, %s78
      %p84 = scmp.eq.s32.totalorder %s16, 0
      %p85 = por %p83, %p84
      %p86 = scmp.ne.s32.totalorder %s75, %s78
      %p87 = scmp.eq.s32.totalorder %s21, 1
      %p88 = por %p86, %p87
      %p89 = scmp.ne.s32.totalorder %s78, %s79
      %p90 = scmp.eq.s32.totalorder %s21, 0
      %p91 = por %p89, %p90
      %p92 = scmp.ne.s32.totalorder %s78, %s79
      %p93 = scmp.eq.s32.totalorder %s22, 1
      %p94 = por %p92, %p93
      %p96 = scmp.ne.s32.totalorder %s79, %s95
      %p97 = scmp.eq.s32.totalorder %s22, 0
      %p98 = por %p96, %p97
      %s99 = ssub.s32 %s24, %s38
      %p100 = scmp.eq.s32.totalorder %s99, 0
      %s102 = sadd.s32 %s101, 1
      %s103 = scalar_select %p100, %s101, %s102
      %p106 = pneg %p100
      %p107 = scmp.eq.s32.totalorder %s16, 1
      %p108 = por %p106, %p107
      %p109 = scmp.ne.s32.totalorder %s101, %s104
      %p110 = scmp.eq.s32.totalorder %s16, 0
      %p111 = por %p109, %p110
      %p112 = scmp.ne.s32.totalorder %s101, %s104
      %p113 = scmp.eq.s32.totalorder %s21, 1
      %p114 = por %p112, %p113
      %p115 = scmp.ne.s32.totalorder %s104, %s105
      %p116 = scmp.eq.s32.totalorder %s21, 0
      %p117 = por %p115, %p116
      %p118 = scmp.ne.s32.totalorder %s104, %s105
      %p119 = scmp.eq.s32.totalorder %s22, 1
      %p120 = por %p118, %p119
      %p122 = scmp.ne.s32.totalorder %s105, %s121
      %p123 = scmp.eq.s32.totalorder %s22, 0
      %p124 = por %p122, %p123
      %s125 = ssub.s32 %s23, %s42
      %s126 = ssub.s32 %s24, %s38
      %s127 = sor.u32 %s125, %s126
      %p128 = scmp.eq.s32.totalorder %s127, 0
      %s130 = sadd.s32 %s129, 1
      %s131 = scalar_select %p128, %s129, %s130
      %p134 = pneg %p128
      %p135 = scmp.eq.s32.totalorder %s16, 1
      %p136 = por %p134, %p135
      %p137 = scmp.ne.s32.totalorder %s129, %s132
      %p138 = scmp.eq.s32.totalorder %s16, 0
      %p139 = por %p137, %p138
      %p140 = scmp.ne.s32.totalorder %s129, %s132
      %p141 = scmp.eq.s32.totalorder %s21, 1
      %p142 = por %p140, %p141
      %p143 = scmp.ne.s32.totalorder %s132, %s133
      %p144 = scmp.eq.s32.totalorder %s21, 0
      %p145 = por %p143, %p144
      %p146 = scmp.ne.s32.totalorder %s132, %s133
      %p147 = scmp.eq.s32.totalorder %s22, 1
      %p148 = por %p146, %p147
      %p150 = scmp.ne.s32.totalorder %s133, %s149
      %p151 = scmp.eq.s32.totalorder %s22, 0
      %p152 = por %p150, %p151
      %p153 = scmp.le.s32.totalorder 1, %s16
      %p154 = scmp.lt.s32.totalorder %s16, 3
      %p155 = pnand %p153, %p154
      %p156 = pneg %p155
      // Predicated region
      $region9: #{tpu_custom_call.1} parent=5 // pred_check
        _
      $region10: #{tpu_custom_call.1} parent=5 // pred_check_branch
        %158 = sbr.rel (%p155) target = $region12
      $region11: #{tpu_custom_call.1} parent=5 // pred_region
        %s159 = ssub.s32 %s16, 1
        // Predicated region
        $region13: #{tpu_custom_call.1} parent=11 // pred_check
          %p160 = pneg %p91
        $region14: #{tpu_custom_call.1} parent=11 // pred_check_branch
          %162 = sbr.rel (%p160) target = $region16
        $region15: #{tpu_custom_call.1} parent=11 // pred_region
          %s163 = smul.u32 16, %s28
          %165 = vsyncadd [#allocation6], 0
          %s166 = sadd.s32 %s27, %s163
          %s167 = smul.addr %s166, 8
          %s168 = scalar_lea.hbm %s1, %s167
          %s169 = sshll.u32 %s168, 4
          %s170 = int_to_ptr.hbm [resolvable:$true] %s169
          %s171 = sshll.u32 [#allocation5], 4
          %s172 = int_to_ptr.vmem [resolvable:$true] %s171
          %177 = dma.hbm_to_vmem [thread:$0]  %s170, 2048, %s172, [#allocation6], 128, 128, 8
        $region16: #{tpu_custom_call.1} parent=11 // pred_fallthru
          _
        // Predicated region
        $region17: #{tpu_custom_call.1} parent=11 // pred_check
          %p178 = pneg %p117
        $region18: #{tpu_custom_call.1} parent=11 // pred_check_branch
          %180 = sbr.rel (%p178) target = $region20
        $region19: #{tpu_custom_call.1} parent=11 // pred_region
          %p181 = scmp.lt.s32.totalorder %s27, 0
          %s182 = scalar_select %p181, %s27, 0
          %s183 = scalar_lea.vmem %s2, %s182
        $region20: #{tpu_custom_call.1} parent=11 // pred_fallthru
          _
      $region12: #{tpu_custom_call.1} parent=5 // pred_fallthru
        _
      %p184 = scmp.lt.s32.totalorder %s16, 2
      // Predicated region
      $region21: #{tpu_custom_call.1} parent=5 // pred_check
        %p185 = pneg %p184
      $region22: #{tpu_custom_call.1} parent=5 // pred_check_branch
        %187 = sbr.rel (%p185) target = $region24
      $region23: #{tpu_custom_call.1} parent=5 // pred_region
        // Predicated region
        $region25: #{tpu_custom_call.1} parent=23 // pred_check
          %p188 = pneg %p57
        $region26: #{tpu_custom_call.1} parent=23 // pred_check_branch
          %190 = sbr.rel (%p188) target = $region28
        $region27: #{tpu_custom_call.1} parent=23 // pred_region
          %s191 = sand.u32 %s47, 1
          %s192 = scalar_lea.sflag [#allocation3], %s191
          %s193 = sand.u32 %s47, 1
          %s194 = smul.addr %s193, 8
          %s195 = scalar_lea.vmem [#allocation2], %s194
          %197 = vsyncadd %s192, 0
          %s198 = sadd.s32 %s25, %s23
          %s199 = smul.addr %s198, 8
          %s200 = scalar_lea.hbm %s0, %s199
          %s202 = sshll.u32 %s200, 4
          %s203 = int_to_ptr.hbm [resolvable:$true] %s202
          %s204 = sshll.u32 %s195, 4
          %s205 = int_to_ptr.vmem [resolvable:$true] %s204
          %207 = dma.hbm_to_vmem [thread:$0]  %s203, 128, %s205, %s192
        $region28: #{tpu_custom_call.1} parent=23 // pred_fallthru
          _
      $region24: #{tpu_custom_call.1} parent=5 // pred_fallthru
        _
      %p208 = scmp.le.s32.totalorder 1, %s16
      %p209 = scmp.lt.s32.totalorder %s16, 3
      %p210 = pnand %p208, %p209
      %p211 = pneg %p210
      // Predicated region
      $region29: #{tpu_custom_call.1} parent=5 // pred_check
        _
      $region30: #{tpu_custom_call.1} parent=5 // pred_check_branch
        %213 = sbr.rel (%p210) target = $region32
      $region31: #{tpu_custom_call.1} parent=5 // pred_region
        %s214 = ssub.s32 %s16, 1
        %s215 = sand.u32 %s50, 1
        %s216 = scalar_lea.sflag [#allocation3], %s215
        %s217 = sand.u32 %s50, 1
        %s218 = smul.addr %s217, 8
        %s219 = scalar_lea.vmem [#allocation2], %s218
        // Predicated region
        $region33: #{tpu_custom_call.1} parent=31 // pred_check
          %p220 = pneg %p63
        $region34: #{tpu_custom_call.1} parent=31 // pred_check_branch
          %222 = sbr.rel (%p220) target = $region36
        $region35: #{tpu_custom_call.1} parent=31 // pred_region
          %224 = dma.done %s216, 128
        $region36: #{tpu_custom_call.1} parent=31 // pred_fallthru
          _
        // Predicated region
        $region37: #{tpu_custom_call.1} parent=31 // pred_check
          %p225 = pneg %p91
        $region38: #{tpu_custom_call.1} parent=31 // pred_check_branch
          %227 = sbr.rel (%p225) target = $region40
        $region39: #{tpu_custom_call.1} parent=31 // pred_region
          %229 = dma.done [#allocation6], 2048
        $region40: #{tpu_custom_call.1} parent=31 // pred_fallthru
          _
        %s230 = sand.u32 %s50, 1
        %s231 = scalar_lea.sflag [#allocation3], %s230
        %s232 = sand.u32 %s50, 1
        %s233 = smul.addr %s232, 8
        %s234 = scalar_lea.vmem [#allocation2], %s233
        %p235 = pneg %p63
        %p236 = pneg %p60
        %p237 = pneg %p91
        %p238 = pneg %p88
        %p239 = scmp.lt.s32.totalorder %s27, 0
        %s240 = scalar_select %p239, %s27, 0
        %s241 = scalar_lea.vmem %s2, %s240
        %p242 = pneg %p117
        %p243 = pneg %p114
        %p244 = pneg %p145
        %p245 = pneg %p142
        %s246 = sand.u32 %s132, 1
        %s247 = scalar_lea.sflag [#allocation4], %s246
        %s248 = sand.u32 %s132, 1
        %s249 = smul.addr %s248, 8
        %s250 = scalar_lea.vmem [#allocation7], %s249
        %s251 = smul.u32 16, %s28
        %p252 = scmp.lt.s32.totalorder %s27, 0
        %s253 = scalar_select %p252, %s27, 0
        %s254 = scalar_lea.vmem %s2, %s253
        %p255 = scmp.eq.s32.totalorder %s28, 0
        // Predicated region
        $region41: #{tpu_custom_call.1} parent=31 // pred_check
          %p256 = pneg %p255
        $region42: #{tpu_custom_call.1} parent=31 // pred_check_branch
          %258 = sbr.rel (%p256) target = $region44
        $region43: #{tpu_custom_call.1} parent=31 // pred_region
          %v259 = vld [vmem:[%s254] sm:$0x1]
          %v261 = vperm.slane %v259, 0
          %263 = vst [vmem:[%s250] sm:$0xff] %v261
        $region44: #{tpu_custom_call.1} parent=31 // pred_fallthru
          _
        %v264 = vld [vmem:[%s250] sm:$0xff]
        %v265 = vld [vmem:[%s219] sm:$0xff]
        %v266 = vld [vmem:[#allocation5] sm:$0xff]
        %v267 = vld [vmem:[#allocation5 + $0x8] sm:$0xff]
        %v268 = vld [vmem:[#allocation5 + $0x10] sm:$0xff]
        %v269 = vld [vmem:[#allocation5 + $0x18] sm:$0xff]
        %v270 = vld [vmem:[#allocation5 + $0x20] sm:$0xff]
        %v271 = vld [vmem:[#allocation5 + $0x28] sm:$0xff]
        %v272 = vld [vmem:[#allocation5 + $0x30] sm:$0xff]
        %v273 = vld [vmem:[#allocation5 + $0x38] sm:$0xff]
        %v274 = vld [vmem:[#allocation5 + $0x40] sm:$0xff]
        %v275 = vld [vmem:[#allocation5 + $0x48] sm:$0xff]
        %v276 = vld [vmem:[#allocation5 + $0x50] sm:$0xff]
        %v277 = vld [vmem:[#allocation5 + $0x58] sm:$0xff]
        %v278 = vld [vmem:[#allocation5 + $0x60] sm:$0xff]
        %v279 = vld [vmem:[#allocation5 + $0x68] sm:$0xff]
        %v280 = vld [vmem:[#allocation5 + $0x70] sm:$0xff]
        %v281 = vld [vmem:[#allocation5 + $0x78] sm:$0xff]
        %282 = vmatpush.msra.mxu0 %v281
        %283 = vmatpush.msra.mxu0 %v280
        %284 = vmatpush.msra.mxu0 %v279
        %285 = vmatpush.msra.mxu0 %v278
        %286 = vmatpush.msra.mxu0 %v277
        %287 = vmatpush.msra.mxu0 %v276
        %288 = vmatpush.msra.mxu0 %v275
        %289 = vmatpush.msra.mxu0 %v274
        %290 = vmatpush.msra.mxu0 %v273
        %291 = vmatpush.msra.mxu0 %v272
        %292 = vmatpush.msra.mxu0 %v271
        %293 = vmatpush.msra.mxu0 %v270
        %294 = vmatpush.msra.mxu0 %v269
        %295 = vmatpush.msra.mxu0 %v268
        %296 = vmatpush.msra.mxu0 %v267
        %297 = vmatpush.msra.mxu0 %v266
        %298 = vmatmul.f32.gmra.mxu0 %v265
        %v299 = vpop.f32.mrf.mxu0
        %v300 = vadd.f32 0.0, %v299
        %301 = vdwg.mxu0
        %v302 = vadd.f32 %v264, %v300
        %303 = vst [vmem:[%s250] sm:$0xff] %v302
        %s304 = sand.u32 %s132, 1
        %s305 = scalar_lea.sflag [#allocation4], %s304
        %s306 = sand.u32 %s132, 1
        %s307 = smul.addr %s306, 8
        %s308 = scalar_lea.vmem [#allocation7], %s307
        // Predicated region
        $region45: #{tpu_custom_call.1} parent=31 // pred_check
          %p309 = pneg %p142
        $region46: #{tpu_custom_call.1} parent=31 // pred_check_branch
          %311 = sbr.rel (%p309) target = $region48
        $region47: #{tpu_custom_call.1} parent=31 // pred_region
          %313 = vsyncadd %s305, 0
          %s314 = sadd.s32 %s27, %s26
          %s315 = smul.addr %s314, 8
          %s316 = scalar_lea.hbm %s3, %s315
          %s318 = sshll.u32 %s308, 4
          %s319 = int_to_ptr.vmem [resolvable:$true] %s318
          %s320 = sshll.u32 %s316, 4
          %s321 = int_to_ptr.hbm [resolvable:$true] %s320
          %323 = dma.vmem_to_hbm [thread:$0]  %s319, 128, %s321, %s305
        $region48: #{tpu_custom_call.1} parent=31 // pred_fallthru
          _
      $region32: #{tpu_custom_call.1} parent=5 // pred_fallthru
        _
      %p324 = scmp.le.s32.totalorder 2, %s16
      // Predicated region
      $region49: #{tpu_custom_call.1} parent=5 // pred_check
        %p325 = pneg %p324
      $region50: #{tpu_custom_call.1} parent=5 // pred_check_branch
        %327 = sbr.rel (%p325) target = $region52
      $region51: #{tpu_custom_call.1} parent=5 // pred_region
        %s328 = ssub.s32 %s16, 2
        // Predicated region
        $region53: #{tpu_custom_call.1} parent=51 // pred_check
          %p329 = pneg %p148
        $region54: #{tpu_custom_call.1} parent=51 // pred_check_branch
          %331 = sbr.rel (%p329) target = $region56
        $region55: #{tpu_custom_call.1} parent=51 // pred_region
          %s332 = sand.u32 %s133, 1
          %s333 = scalar_lea.sflag [#allocation4], %s332
          %s334 = sand.u32 %s133, 1
          %s335 = smul.addr %s334, 8
          %s336 = scalar_lea.vmem [#allocation7], %s335
          %338 = dma.done %s333, 128
        $region56: #{tpu_custom_call.1} parent=51 // pred_fallthru
          _
      $region52: #{tpu_custom_call.1} parent=5 // pred_fallthru
        _
    $region6: #{tpu_custom_call.1} parent=1 // loop_footer
      %s20 = sadd.s32 1, %s16
    $region7: #{tpu_custom_call.1} parent=1 // loop_footer_branch
      %15 = sbr.rel target = $region3
    $region8: #{tpu_custom_call.1} parent=1 // loop_exit
      _
    %339 = vsyncpa [#allocation3], 1
    %s340 = scalar_lea.sflag [#allocation3], 1
    %341 = vsyncpa %s340, 1
    %342 = vsyncpa [#allocation6], 1
    %343 = vsyncpa [#allocation4], 1
    %s344 = scalar_lea.sflag [#allocation4], 1
    %345 = vsyncpa %s344, 1

</llo_original>
